<compile_context>
chip_gen: v7x
topology: tpu7x:2x2x1
jax: 0.10.0
libtpu: 0.0.40
codegen_flags: <defaults>
</compile_context>

<pallas_src>
import functools

import jax
import jax.numpy as jnp
from jax import lax
from jax.experimental import pallas as pl
from jax.experimental.pallas import tpu as pltpu

_LANES = 128      # vreg lane width
_SUBLANES = 8     # f32 sublane tile


def _ceo_loss_kernel(x_ref, cy_ref, out_ref, *, num_classes, batch, needs_mask):
    """One grid step processes an (rb, 128) slab of the batch.

    x_ref  : (rb, 128) f32  ordinal/regression output per sample
    cy_ref : (rb, 128) i32  target level index per sample
    out_ref: (8, 128)  f32  this tile's partial sum (row 0 = per-lane partials)
    """
    i = pl.program_id(0)

    x = x_ref[...]                                   # (rb, 128) f32
    cy = cy_ref[...].astype(jnp.float32)             # (rb, 128) f32
    cmax = jnp.float32(num_classes - 1)

    # level[k] = k - (C-1): target logit directly, no one-hot / gather / XLU.
    tgt = -jnp.abs(x - (cy - cmax))

    # max_j -|x - level_j| in closed form: nearest (clipped) integer level.
    # The tie-breaking direction of the rounding is irrelevant for the max.
    nearest = jnp.clip(jnp.floor(x + jnp.float32(0.5)), -cmax, cmax)
    m = -jnp.abs(x - nearest)

    # sum_j exp(logit_j - m), unrolled over the 2C-1 compile-time levels.
    s = jnp.zeros_like(x)
    for lvl in range(-(num_classes - 1), num_classes):
        s = s + jnp.exp(-jnp.abs(x - jnp.float32(lvl)) - m)

    per_sample = (m + jnp.log(s)) - tgt              # (rb, 128): lse - target

    def _emit(vals):
        part = jnp.sum(vals, axis=0, keepdims=True)                   # (1, 128)
        rowp = lax.broadcasted_iota(jnp.int32, (_SUBLANES, _LANES), 0)
        out_ref[...] = jnp.where(rowp == 0, part, jnp.float32(0.0))   # (8, 128)

    if needs_mask:
        last = pl.num_programs(0) - 1

        @pl.when(i != last)
        def _():
            _emit(per_sample)

        @pl.when(i == last)
        def _():
            # Only the last tile can contain wrapper-padded lanes or Pallas
            # out-of-bounds rows.  per_sample is computed element-wise with no
            # cross-element mixing, so any garbage (NaN/Inf) in padded
            # positions is zeroed here *before* the sublane reduction.
            rb = x.shape[0]
            row = lax.broadcasted_iota(jnp.int32, x.shape, 0)
            lane = lax.broadcasted_iota(jnp.int32, x.shape, 1)
            flat = (i * rb + row) * _LANES + lane
            _emit(jnp.where(flat < batch, per_sample, jnp.float32(0.0)))
    else:
        _emit(per_sample)


def ceo_loss(x, y, logits_4cls, class_y, *, num_classes=4, rows_per_tile=1024):
    """Pallas equivalent of the value CEOLoss.forward returns.

    x:           (B,) float   ordinal/regression output
    y:           (B,) int     feeds only un-returned intermediates (unused)
    logits_4cls: (B, C) float feeds only un-returned intermediates (unused)
    class_y:     (B,) int     target level index in [0, 2*num_classes-1)
    returns:     scalar f32 loss
    """
    del y, logits_4cls  # dead code in the reference forward

    batch = int(x.shape[0])
    num_levels = 2 * num_classes - 1

    # Dense 2-D layout: 128 samples per lane row, rows on the sublane axis.
    rows = (batch + _LANES - 1) // _LANES
    padded = rows * _LANES
    x_flat = x.astype(jnp.float32).reshape(-1)
    cy_flat = class_y.astype(jnp.int32).reshape(-1)
    if padded != batch:
        x_flat = jnp.pad(x_flat, (0, padded - batch))
        cy_flat = jnp.pad(cy_flat, (0, padded - batch))
    x2 = x_flat.reshape(rows, _LANES)
    cy2 = cy_flat.reshape(rows, _LANES)

    # Row tile: multiple of 8 sublanes when a strict sub-block, else full rows.
    rb = min(int(rows_per_tile), rows)
    if rb < rows:
        rb = max(_SUBLANES, (rb // _SUBLANES) * _SUBLANES)
    num_tiles = (rows + rb - 1) // rb
    needs_mask = (num_tiles * rb * _LANES != batch)

    kernel = functools.partial(
        _ceo_loss_kernel, num_classes=num_classes, batch=batch,
        needs_mask=needs_mask)

    cost = pl.CostEstimate(
        flops=batch * (6 * num_levels + 16),
        transcendentals=batch * (num_levels + 1),
        bytes_accessed=8 * padded + 4 * num_tiles * _SUBLANES * _LANES,
    )

    partials = pl.pallas_call(
        kernel,
        out_shape=jax.ShapeDtypeStruct((num_tiles * _SUBLANES, _LANES), jnp.float32),
        grid_spec=pltpu.PrefetchScalarGridSpec(
            num_scalar_prefetch=0,
            grid=(num_tiles,),
            in_specs=[
                pl.BlockSpec((rb, _LANES), lambda i: (i, 0)),   # x
                pl.BlockSpec((rb, _LANES), lambda i: (i, 0)),   # class_y
            ],
            out_specs=pl.BlockSpec((_SUBLANES, _LANES), lambda i: (i, 0)),
        ),
        compiler_params=pltpu.CompilerParams(
            dimension_semantics=("parallel",)),   # independent tiles (megacore-friendly)
        cost_estimate=cost,
    )(x2, cy2)

    # Tiny final reduction outside the kernel keeps the grid axis parallel.
    return jnp.sum(partials) / jnp.float32(batch)


def _reference(x, class_y, num_classes):
    levels = jnp.arange(-num_classes + 1, num_classes, dtype=jnp.float32)
    logits = -jnp.abs(x[:, None].astype(jnp.float32) - levels[None, :])
    return jnp.mean(jax.nn.logsumexp(logits, axis=1)
                    - logits[jnp.arange(x.shape[0]), class_y])


if __name__ == "__main__":
    key = jax.random.PRNGKey(0)
    k_x, k_y, k_l, k_c = jax.random.split(key, 4)

    num_classes = 4
    num_levels = 2 * num_classes - 1   # 7 ordinal levels
    batch = 8

    x = jax.random.uniform(
        k_x, (batch,), jnp.float32,
        minval=-(num_classes - 1), maxval=num_classes - 1)
    y = jax.random.randint(k_y, (batch,), 0, num_classes, dtype=jnp.int32)          # dead code in spec
    logits_4cls = jax.random.normal(k_l, (batch, num_classes), dtype=jnp.float32)   # dead code in spec
    class_y = jax.random.randint(k_c, (batch,), 0, num_levels, dtype=jnp.int32)

    loss = ceo_loss(x, y, logits_4cls, class_y, num_classes=num_classes)
    jax.block_until_ready(loss)
    ref = _reference(x, class_y, num_classes)
    assert jnp.allclose(loss, ref, atol=1e-4, rtol=1e-4), (float(loss), float(ref))

    # Also exercise the multi-tile / masked-last-tile / parallel-partials path
    # (small problem, small rows_per_tile override).
    batch2 = 3000
    k_x2, k_c2 = jax.random.split(k_x)
    x_big = jax.random.uniform(
        k_x2, (batch2,), jnp.float32,
        minval=-(num_classes - 1), maxval=num_classes - 1)
    cy_big = jax.random.randint(k_c2, (batch2,), 0, num_levels, dtype=jnp.int32)
    loss2 = ceo_loss(x_big, None, None, cy_big,
                     num_classes=num_classes, rows_per_tile=8)
    jax.block_until_ready(loss2)
    ref2 = _reference(x_big, cy_big, num_classes)
    assert jnp.allclose(loss2, ref2, atol=1e-4, rtol=1e-4), (float(loss2), float(ref2))

    print("KERNEL_OK")
</pallas_src>

<mosaic_0001>
module attributes {stable_mosaic.version = 11 : i64} {
  func.func @_ceo_loss_kernel(%arg0: i32, %arg1: memref<1x128xf32, #tpu.memory_space<vmem>>, %arg2: memref<1x128xi32, #tpu.memory_space<vmem>>, %arg3: memref<8x128xf32, #tpu.memory_space<vmem>>) attributes {dimension_semantics = [#tpu.dimension_semantics<parallel>], iteration_bounds = array<i64: 1>, scalar_prefetch = 0 : i64, scratch_operands = 0 : i64, tpu.core_type = #tpu.core_type<tc>, window_params = [{transform_indices = @transform_0, window_bounds = array<i64: 1, 128>}, {transform_indices = @transform_1, window_bounds = array<i64: 1, 128>}, {transform_indices = @transform_2, window_bounds = array<i64: 8, 128>}]} {
    %c0 = arith.constant 0 : index
    %c0_0 = arith.constant 0 : index
    %0 = vector.load %arg1[%c0, %c0_0] : memref<1x128xf32, #tpu.memory_space<vmem>>, vector<1x128xf32>
    %c0_1 = arith.constant 0 : index
    %c0_2 = arith.constant 0 : index
    %1 = vector.load %arg2[%c0_1, %c0_2] : memref<1x128xi32, #tpu.memory_space<vmem>>, vector<1x128xi32>
    %2 = arith.sitofp %1 : vector<1x128xi32> to vector<1x128xf32>
    %cst = arith.constant 3.000000e+00 : f32
    %3 = vector.broadcast %cst : f32 to vector<1x128xf32>
    %4 = arith.subf %2, %3 : vector<1x128xf32>
    %5 = arith.subf %0, %4 : vector<1x128xf32>
    %6 = math.absf %5 : vector<1x128xf32>
    %cst_3 = arith.constant 0.000000e+00 : f32
    %7 = vector.broadcast %cst_3 : f32 to vector<1x128xf32>
    %8 = arith.subf %7, %6 : vector<1x128xf32>
    %cst_4 = arith.constant 5.000000e-01 : f32
    %9 = vector.broadcast %cst_4 : f32 to vector<1x128xf32>
    %10 = arith.addf %0, %9 : vector<1x128xf32>
    %11 = math.floor %10 : vector<1x128xf32>
    %cst_5 = arith.constant 0.000000e+00 : f32
    %cst_6 = arith.constant 3.000000e+00 : f32
    %12 = arith.subf %cst_5, %cst_6 : f32
    %cst_7 = arith.constant 3.000000e+00 : f32
    %13 = vector.broadcast %12 : f32 to vector<1x128xf32>
    %14 = arith.maximumf %13, %11 : vector<1x128xf32>
    %15 = vector.broadcast %cst_7 : f32 to vector<1x128xf32>
    %16 = arith.minimumf %15, %14 : vector<1x128xf32>
    %17 = arith.subf %0, %16 : vector<1x128xf32>
    %18 = math.absf %17 : vector<1x128xf32>
    %cst_8 = arith.constant 0.000000e+00 : f32
    %19 = vector.broadcast %cst_8 : f32 to vector<1x128xf32>
    %20 = arith.subf %19, %18 : vector<1x128xf32>
    %cst_9 = arith.constant 0.000000e+00 : f32
    %21 = vector.broadcast %cst_9 : f32 to vector<1x128xf32>
    %cst_10 = arith.constant -3.000000e+00 : f32
    %22 = vector.broadcast %cst_10 : f32 to vector<1x128xf32>
    %23 = arith.subf %0, %22 : vector<1x128xf32>
    %24 = math.absf %23 : vector<1x128xf32>
    %cst_11 = arith.constant 0.000000e+00 : f32
    %25 = vector.broadcast %cst_11 : f32 to vector<1x128xf32>
    %26 = arith.subf %25, %24 : vector<1x128xf32>
    %27 = arith.subf %26, %20 : vector<1x128xf32>
    %28 = math.exp %27 : vector<1x128xf32>
    %29 = arith.addf %21, %28 : vector<1x128xf32>
    %cst_12 = arith.constant -2.000000e+00 : f32
    %30 = vector.broadcast %cst_12 : f32 to vector<1x128xf32>
    %31 = arith.subf %0, %30 : vector<1x128xf32>
    %32 = math.absf %31 : vector<1x128xf32>
    %cst_13 = arith.constant 0.000000e+00 : f32
    %33 = vector.broadcast %cst_13 : f32 to vector<1x128xf32>
    %34 = arith.subf %33, %32 : vector<1x128xf32>
    %35 = arith.subf %34, %20 : vector<1x128xf32>
    %36 = math.exp %35 : vector<1x128xf32>
    %37 = arith.addf %29, %36 : vector<1x128xf32>
    %cst_14 = arith.constant -1.000000e+00 : f32
    %38 = vector.broadcast %cst_14 : f32 to vector<1x128xf32>
    %39 = arith.subf %0, %38 : vector<1x128xf32>
    %40 = math.absf %39 : vector<1x128xf32>
    %cst_15 = arith.constant 0.000000e+00 : f32
    %41 = vector.broadcast %cst_15 : f32 to vector<1x128xf32>
    %42 = arith.subf %41, %40 : vector<1x128xf32>
    %43 = arith.subf %42, %20 : vector<1x128xf32>
    %44 = math.exp %43 : vector<1x128xf32>
    %45 = arith.addf %37, %44 : vector<1x128xf32>
    %cst_16 = arith.constant 0.000000e+00 : f32
    %46 = vector.broadcast %cst_16 : f32 to vector<1x128xf32>
    %47 = arith.subf %0, %46 : vector<1x128xf32>
    %48 = math.absf %47 : vector<1x128xf32>
    %cst_17 = arith.constant 0.000000e+00 : f32
    %49 = vector.broadcast %cst_17 : f32 to vector<1x128xf32>
    %50 = arith.subf %49, %48 : vector<1x128xf32>
    %51 = arith.subf %50, %20 : vector<1x128xf32>
    %52 = math.exp %51 : vector<1x128xf32>
    %53 = arith.addf %45, %52 : vector<1x128xf32>
    %cst_18 = arith.constant 1.000000e+00 : f32
    %54 = vector.broadcast %cst_18 : f32 to vector<1x128xf32>
    %55 = arith.subf %0, %54 : vector<1x128xf32>
    %56 = math.absf %55 : vector<1x128xf32>
    %cst_19 = arith.constant 0.000000e+00 : f32
    %57 = vector.broadcast %cst_19 : f32 to vector<1x128xf32>
    %58 = arith.subf %57, %56 : vector<1x128xf32>
    %59 = arith.subf %58, %20 : vector<1x128xf32>
    %60 = math.exp %59 : vector<1x128xf32>
    %61 = arith.addf %53, %60 : vector<1x128xf32>
    %cst_20 = arith.constant 2.000000e+00 : f32
    %62 = vector.broadcast %cst_20 : f32 to vector<1x128xf32>
    %63 = arith.subf %0, %62 : vector<1x128xf32>
    %64 = math.absf %63 : vector<1x128xf32>
    %cst_21 = arith.constant 0.000000e+00 : f32
    %65 = vector.broadcast %cst_21 : f32 to vector<1x128xf32>
    %66 = arith.subf %65, %64 : vector<1x128xf32>
    %67 = arith.subf %66, %20 : vector<1x128xf32>
    %68 = math.exp %67 : vector<1x128xf32>
    %69 = arith.addf %61, %68 : vector<1x128xf32>
    %cst_22 = arith.constant 3.000000e+00 : f32
    %70 = vector.broadcast %cst_22 : f32 to vector<1x128xf32>
    %71 = arith.subf %0, %70 : vector<1x128xf32>
    %72 = math.absf %71 : vector<1x128xf32>
    %cst_23 = arith.constant 0.000000e+00 : f32
    %73 = vector.broadcast %cst_23 : f32 to vector<1x128xf32>
    %74 = arith.subf %73, %72 : vector<1x128xf32>
    %75 = arith.subf %74, %20 : vector<1x128xf32>
    %76 = math.exp %75 : vector<1x128xf32>
    %77 = arith.addf %69, %76 : vector<1x128xf32>
    %78 = math.log %77 : vector<1x128xf32>
    %79 = arith.addf %20, %78 : vector<1x128xf32>
    %80 = arith.subf %79, %8 : vector<1x128xf32>
    %c0_i32 = arith.constant 0 : i32
    %81 = arith.cmpi ne, %arg0, %c0_i32 : i32
    %82 = arith.extui %81 : i1 to i32
    %c0_i32_24 = arith.constant 0 : i32
    %83 = arith.cmpi ne, %82, %c0_i32_24 : i32
    scf.if %83 {
      %cst_27 = arith.constant dense<0.000000e+00> : vector<128xf32>
      %87 = vector.multi_reduction <add>, %80, %cst_27 [0] : vector<1x128xf32> to vector<128xf32>
      %88 = vector.shape_cast %87 : vector<128xf32> to vector<1x128xf32>
      %89 = tpu.iota {dimensions = array<i32: 0>} : vector<8x128xi32>
      %c0_i32_28 = arith.constant 0 : i32
      %90 = vector.broadcast %c0_i32_28 : i32 to vector<8x128xi32>
      %91 = arith.cmpi eq, %89, %90 : vector<8x128xi32>
      %cst_29 = arith.constant 0.000000e+00 : f32
      %92 = vector.shape_cast %88 : vector<1x128xf32> to vector<1x128xf32>
      %93 = vector.broadcast %92 : vector<1x128xf32> to vector<8x128xf32>
      %94 = vector.broadcast %cst_29 : f32 to vector<8x128xf32>
      %95 = arith.select %91, %93, %94 : vector<8x128xi1>, vector<8x128xf32>
      %c0_30 = arith.constant 0 : index
      %c0_31 = arith.constant 0 : index
      %96 = vector.load %arg3[%c0_30, %c0_31] : memref<8x128xf32, #tpu.memory_space<vmem>>, vector<8x128xf32>
      tpu.vector_store %arg3[%c0_30, %c0_31], %95 {strides = array<i32>} : memref<8x128xf32, #tpu.memory_space<vmem>>, vector<8x128xf32>,
    } else {
    }
    %c0_i32_25 = arith.constant 0 : i32
    %84 = arith.cmpi eq, %arg0, %c0_i32_25 : i32
    %85 = arith.extui %84 : i1 to i32
    %c0_i32_26 = arith.constant 0 : i32
    %86 = arith.cmpi ne, %85, %c0_i32_26 : i32
    scf.if %86 {
      %87 = tpu.iota {dimensions = array<i32: 0>} : vector<1x128xi32>
      %88 = tpu.iota {dimensions = array<i32: 1>} : vector<1x128xi32>
      %c1_i32 = arith.constant 1 : i32
      %89 = arith.muli %arg0, %c1_i32 : i32
      %90 = vector.broadcast %89 : i32 to vector<1x128xi32>
      %91 = arith.addi %90, %87 : vector<1x128xi32>
      %c128_i32 = arith.constant 128 : i32
      %92 = vector.broadcast %c128_i32 : i32 to vector<1x128xi32>
      %93 = arith.muli %91, %92 : vector<1x128xi32>
      %94 = arith.addi %93, %88 : vector<1x128xi32>
      %c8_i32 = arith.constant 8 : i32
      %95 = vector.broadcast %c8_i32 : i32 to vector<1x128xi32>
      %96 = arith.cmpi slt, %94, %95 : vector<1x128xi32>
      %cst_27 = arith.constant 0.000000e+00 : f32
      %97 = vector.broadcast %cst_27 : f32 to vector<1x128xf32>
      %98 = arith.select %96, %80, %97 : vector<1x128xi1>, vector<1x128xf32>
      %cst_28 = arith.constant dense<0.000000e+00> : vector<128xf32>
      %99 = vector.multi_reduction <add>, %98, %cst_28 [0] : vector<1x128xf32> to vector<128xf32>
      %100 = vector.shape_cast %99 : vector<128xf32> to vector<1x128xf32>
      %101 = tpu.iota {dimensions = array<i32: 0>} : vector<8x128xi32>
      %c0_i32_29 = arith.constant 0 : i32
      %102 = vector.broadcast %c0_i32_29 : i32 to vector<8x128xi32>
      %103 = arith.cmpi eq, %101, %102 : vector<8x128xi32>
      %cst_30 = arith.constant 0.000000e+00 : f32
      %104 = vector.shape_cast %100 : vector<1x128xf32> to vector<1x128xf32>
      %105 = vector.broadcast %104 : vector<1x128xf32> to vector<8x128xf32>
      %106 = vector.broadcast %cst_30 : f32 to vector<8x128xf32>
      %107 = arith.select %103, %105, %106 : vector<8x128xi1>, vector<8x128xf32>
      %c0_31 = arith.constant 0 : index
      %c0_32 = arith.constant 0 : index
      %108 = vector.load %arg3[%c0_31, %c0_32] : memref<8x128xf32, #tpu.memory_space<vmem>>, vector<8x128xf32>
      tpu.vector_store %arg3[%c0_31, %c0_32], %107 {strides = array<i32>} : memref<8x128xf32, #tpu.memory_space<vmem>>, vector<8x128xf32>,
    } else {
    }
    return
  }
  func.func @transform_0(%arg0: i32) -> (i32, i32) {
    %c0_i32 = arith.constant 0 : i32
    %c0_i32_0 = arith.constant 0 : i32
    return %arg0, %c0_i32 : i32, i32
  }
  func.func @transform_1(%arg0: i32) -> (i32, i32) {
    %c0_i32 = arith.constant 0 : i32
    %c0_i32_0 = arith.constant 0 : i32
    return %arg0, %c0_i32 : i32, i32
  }
  func.func @transform_2(%arg0: i32) -> (i32, i32) {
    %c0_i32 = arith.constant 0 : i32
    %c0_i32_0 = arith.constant 0 : i32
    return %arg0, %c0_i32 : i32, i32
  }
}

</mosaic_0001>

<llo_original>
// kernel: tpu_custom_call.1
$region0: #{tpu_custom_call.1}
  #allocation0 [shape = 'u32[]', space=smem, size = 0x4, offset = 0x4, fixed_abs, tag = 'smem constant byte address 0x4 - core index']
  #allocation1 [shape = 'u32[144,128]{1,0:T(1,128)}', space=vmem, size = 0x12000, scoped, tag = 'internal scratch']
  %s0 = inlined_call_operand.hbm [shape: f32[1,128], index: 0, kind: input, shape index: {}]
  %s1 = inlined_call_operand.vmem [shape: s32[1,128], index: 1, kind: input, shape index: {}]
  %s2 = inlined_call_operand.hbm [shape: f32[8,128], index: 2, kind: output, shape index: {}]
  %s3 = sld [smem:[#allocation0]]
  $region30: #{tpu_custom_call.1} parent=0
    _
  %s5 = ssub.s32 1, %s3
  %s6 = scalar_select 0, %s5, %s3
  $region1: #{tpu_custom_call.1} parent=0
    #allocation2 [shape = 'u8[512]{0}', space=vmem, size = 0x400, scoped, tag = 'input window, operand 0, single buffered']
    #allocation3 [shape = 's32[1]{0}', space=sflag, size = 0x4, scoped, tag = 'scoped memory for tpu_custom_call.1']
    #allocation4 [shape = 's32[1]{0}', space=sflag, size = 0x4, scoped, tag = 'scoped memory for tpu_custom_call.1']
    #allocation5 [shape = 'u8[4096]{0}', space=vmem, size = 0x1000, scoped, tag = 'output window, operand 0, single buffered']
    %7 = vsyncpa [#allocation3], 0
    %8 = vsyncpa [#allocation4], 0
    // Predicated region
    $region2: #{tpu_custom_call.1} parent=1 // pred_check
      _
    $region3: #{tpu_custom_call.1} parent=1 // pred_check_branch
      %10 = sbr.rel (0) target = $region5
    $region4: #{tpu_custom_call.1} parent=1 // pred_region
      %s12 = ssub.s32 16, 16
      %13 = vsyncadd [#allocation3], %s12
      %s15 = sshll.u32 [#allocation2], 4
      %s16 = int_to_ptr.vmem [resolvable:$true] %s15
      %18 = dma.hbm_to_vmem [thread:$0]  %s0, 16, %s16, [#allocation3]
    $region5: #{tpu_custom_call.1} parent=1 // pred_fallthru
      _
    // Predicated region
    $region6: #{tpu_custom_call.1} parent=1 // pred_check
      _
    $region7: #{tpu_custom_call.1} parent=1 // pred_check_branch
      %20 = sbr.rel (0) target = $region9
    $region8: #{tpu_custom_call.1} parent=1 // pred_region
      _
    $region9: #{tpu_custom_call.1} parent=1 // pred_fallthru
      _
    // Predicated region
    $region10: #{tpu_custom_call.1} parent=1 // pred_check
      _
    $region11: #{tpu_custom_call.1} parent=1 // pred_check_branch
      %22 = sbr.rel (0) target = $region13
    $region12: #{tpu_custom_call.1} parent=1 // pred_region
      %23 = dma.done [#allocation3], 16
    $region13: #{tpu_custom_call.1} parent=1 // pred_fallthru
      _
    %v24 = vld [vmem:[#allocation2] sm:$0x1]
    %v25 = vld [vmem:[%s1] sm:$0x1]
    %v26 = vcvt.s32.f32 %v25
    %v27 = vsub.f32 %v26, 3.0
    %v28 = vsub.f32 %v24, %v27
    %v29 = vand.u32 2147483647, %v28
    %v30 = vsub.f32 0.0, %v29
    %v31 = vadd.f32 %v24, 0.5
    %v32 = vfloor.f32 %v31
    %v33 = vmax.f32 %v32, -3.0
    %v34 = vmin.f32 %v33, 3.0
    %v35 = vsub.f32 %v24, %v34
    %v36 = vand.u32 2147483647, %v35
    %v37 = vsub.f32 0.0, %v36
    %v38 = vsub.f32 %v24, -3.0
    %v39 = vand.u32 2147483647, %v38
    %v40 = vsub.f32 0.0, %v39
    %v41 = vsub.f32 %v40, %v37
    %v42 = vmul.f32 %v41, 1.442695
    %v43 = vpow.pop %v42
    %v44 = vadd.f32 %v43, 0.0
    %v45 = vsub.f32 %v24, -2.0
    %v46 = vand.u32 2147483647, %v45
    %v47 = vsub.f32 0.0, %v46
    %v48 = vsub.f32 %v47, %v37
    %v49 = vmul.f32 %v48, 1.442695
    %v50 = vpow.pop %v49
    %v51 = vadd.f32 %v44, %v50
    %v52 = vsub.f32 %v24, -1.0
    %v53 = vand.u32 2147483647, %v52
    %v54 = vsub.f32 0.0, %v53
    %v55 = vsub.f32 %v54, %v37
    %v56 = vmul.f32 %v55, 1.442695
    %v57 = vpow.pop %v56
    %v58 = vadd.f32 %v51, %v57
    %v59 = vand.u32 2147483647, %v24
    %v60 = vsub.f32 0.0, %v59
    %v61 = vsub.f32 %v60, %v37
    %v62 = vmul.f32 %v61, 1.442695
    %v63 = vpow.pop %v62
    %v64 = vadd.f32 %v58, %v63
    %v65 = vsub.f32 %v24, 1.0
    %v66 = vand.u32 2147483647, %v65
    %v67 = vsub.f32 0.0, %v66
    %v68 = vsub.f32 %v67, %v37
    %v69 = vmul.f32 %v68, 1.442695
    %v70 = vpow.pop %v69
    %v71 = vadd.f32 %v64, %v70
    %v72 = vsub.f32 %v24, 2.0
    %v73 = vand.u32 2147483647, %v72
    %v74 = vsub.f32 0.0, %v73
    %v75 = vsub.f32 %v74, %v37
    %v76 = vmul.f32 %v75, 1.442695
    %v77 = vpow.pop %v76
    %v78 = vadd.f32 %v71, %v77
    %v79 = vsub.f32 %v24, 3.0
    %v80 = vand.u32 2147483647, %v79
    %v81 = vsub.f32 0.0, %v80
    %v82 = vsub.f32 %v81, %v37
    %v83 = vmul.f32 %v82, 1.442695
    %v84 = vpow.pop %v83
    %v85 = vadd.f32 %v78, %v84
    %v86 = vlog2.pop %v85
    %v87 = vmul.f32 %v86, 0.6931472
    %v88 = vadd.f32 %v37, %v87
    %v89 = vsub.f32 %v88, %v30
    %p90 = scmp.ne.s32.totalorder 0, 0
    // Predicated region
    $region14: #{tpu_custom_call.1} parent=1 // pred_check
      %p91 = pneg %p90
    $region15: #{tpu_custom_call.1} parent=1 // pred_check_branch
      %93 = sbr.rel (%p91) target = $region17
    $region16: #{tpu_custom_call.1} parent=1 // pred_region
      %v94 = vadd.f32 %v89, 0.0
      %v95 = vlaneseq
      %v96 = vshrl.u32 %v95, 7
      %vm97 = vcmp.eq.s32.totalorder %v96, 0
      %v99 = vlaneseq
      %v100 = vshrl.u32 %v99, 7
      %v101 = vsub.s32 0, %v100
      %v102 = vrot.slane %v94, %v101
      %v104 = vsel %vm97, %v102, 0.0
      %105 = vst [vmem:[#allocation5] sm:$0xff] %v104
    $region17: #{tpu_custom_call.1} parent=1 // pred_fallthru
      _
    %p106 = scmp.eq.s32.totalorder 0, 0
    // Predicated region
    $region18: #{tpu_custom_call.1} parent=1 // pred_check
      %p107 = pneg %p106
    $region19: #{tpu_custom_call.1} parent=1 // pred_check_branch
      %109 = sbr.rel (%p107) target = $region21
    $region20: #{tpu_custom_call.1} parent=1 // pred_region
      %v110 = vlaneseq
      %v111 = vshrl.u32 %v110, 7
      %v112 = vlaneseq
      %v113 = vand.u32 %v112, 127
      %v114 = vstv 0
      %v115 = vadd.s32 %v114, %v111
      %v116 = vmul.u32 %v115, 128
      %v117 = vadd.s32 %v116, %v113
      %vm118 = vcmp.lt.s32.totalorder %v117, 8
      %v119 = vsel %vm118, %v89, 0.0
      %v120 = vadd.f32 %v119, 0.0
      %vm121 = vcmp.eq.s32.totalorder %v111, 0
      %v122 = vlaneseq
      %v123 = vshrl.u32 %v122, 7
      %v124 = vsub.s32 0, %v123
      %v125 = vrot.slane %v120, %v124
      %v126 = vsel %vm121, %v125, 0.0
      %127 = vst [vmem:[#allocation5] sm:$0xff] %v126
    $region21: #{tpu_custom_call.1} parent=1 // pred_fallthru
      _
    // Predicated region
    $region22: #{tpu_custom_call.1} parent=1 // pred_check
      _
    $region23: #{tpu_custom_call.1} parent=1 // pred_check_branch
      %129 = sbr.rel (0) target = $region25
    $region24: #{tpu_custom_call.1} parent=1 // pred_region
      %s131 = ssub.s32 128, 128
      %132 = vsyncadd [#allocation4], %s131
      %s134 = sshll.u32 [#allocation5], 4
      %s135 = int_to_ptr.vmem [resolvable:$true] %s134
      %137 = dma.vmem_to_hbm [thread:$0]  %s135, 128, %s2, [#allocation4]
    $region25: #{tpu_custom_call.1} parent=1 // pred_fallthru
      _
    // Predicated region
    $region26: #{tpu_custom_call.1} parent=1 // pred_check
      _
    $region27: #{tpu_custom_call.1} parent=1 // pred_check_branch
      %139 = sbr.rel (0) target = $region29
    $region28: #{tpu_custom_call.1} parent=1 // pred_region
      %140 = dma.done [#allocation4], 128
    $region29: #{tpu_custom_call.1} parent=1 // pred_fallthru
      _
    %141 = vsyncpa [#allocation3], 1
    %142 = vsyncpa [#allocation4], 1

</llo_original>
